<compile_context>
chip_gen: v6e
topology: v6e:2x2x1
jax: 0.10.0
libtpu: 0.0.40
codegen_flags: <defaults>
</compile_context>

<pallas_src>
import functools

import jax
import jax.numpy as jnp
from jax.experimental import pallas as pl
from jax.experimental.pallas import tpu as pltpu

EPS = 1e-5  # torch.nn.LayerNorm default


def _round_up(n, m):
    return (n + m - 1) // m * m


def _ln_ffn_kernel(attn_ref, x_ref, w1_ref, w2_ref, bias_ref, o_ref):
    """Fused residual-add + LayerNorm(+folded affine) + Linear + ReLU + Linear.

    attn_ref : (TR, D)  attention output tile (input dtype)
    x_ref    : (TR, D)  residual input tile   (input dtype)
    w1_ref   : (D, D)   gamma-folded first Linear weight, bf16, y = x @ W
    w2_ref   : (D, D)   second Linear weight, bf16
    bias_ref : (2, D)   f32: row 0 = beta@W1 + b1, row 1 = b2
    o_ref    : (TR, D)
    """
    tr = attn_ref.shape[0]
    b1 = bias_ref[0:1, :]          # (1, D) f32
    b2 = bias_ref[1:2, :]          # (1, D) f32

    # Static 2-way sub-chunking: VPU/XLU/EUP work of one chunk fills MXU
    # bubbles of the other (different VLIW slots).  Chunk rows must stay a
    # multiple of 8 so the f32 sublane layout is preserved.
    n_chunks = 2 if (tr >= 16 and tr % 16 == 0) else 1
    cs = tr // n_chunks

    for c in range(n_chunks):
        r = pl.ds(c * cs, cs)      # static start/size slice of the tile

        # --- residual add + LayerNorm in f32 (matches torch.nn.LayerNorm) ---
        h = attn_ref[r, :].astype(jnp.float32) + x_ref[r, :].astype(jnp.float32)
        mean = jnp.mean(h, axis=-1, keepdims=True)
        m2 = jnp.mean(h * h, axis=-1, keepdims=True)
        var = m2 - mean * mean                       # one-pass biased variance
        xn = (h - mean) * jax.lax.rsqrt(var + EPS)   # gamma/beta folded into W1/b1

        # --- FFN: Linear -> ReLU -> Linear, bf16 MXU operands, f32 accumulate ---
        z = jnp.dot(xn.astype(w1_ref.dtype), w1_ref[...],
                    preferred_element_type=jnp.float32)
        z = jnp.maximum(z + b1, 0.0)
        y = jnp.dot(z.astype(w2_ref.dtype), w2_ref[...],
                    preferred_element_type=jnp.float32)
        o_ref[r, :] = (y + b2).astype(o_ref.dtype)


@functools.partial(jax.jit, static_argnames=("tile_rows",))
def encoder_ln_ffn(attn_out, x, gamma, beta, w1, b1, w2, b2, *, tile_rows=512):
    """Fused textEncoder sub-layer: FFN(LayerNorm(attn_out + x)).

    attn_out, x : (B, S, D), D lane-dense (multiple of 128).
    gamma, beta : (D,) LayerNorm affine params.
    w1, b1, w2, b2 : FFN params stored so y = x @ W (i.e. torch weight.T).
    Returns (B, S, D).

    tile_rows: 512-1024 recommended (activation tiles at D=128 are only
    tr*D*4 = 256-512 KiB per buffer); must be a multiple of 8 for f32 inputs
    (16 for bf16 inputs).  Weights are VMEM-resident across the grid.
    """
    B, S, D = x.shape
    assert D % 128 == 0, "last dim must be lane-dense (multiple of 128)"
    rows = B * S

    act_item = jnp.dtype(x.dtype).itemsize
    sub = 8 if act_item == 4 else 16            # sublane multiple for layout
    if tile_rows % sub != 0:
        raise ValueError(f"tile_rows must be a multiple of {sub} for dtype {x.dtype}")

    # Clamp the row tile; keep it a multiple of `sub`.  Ensure >= 2 grid steps
    # whenever rows allow, so ("parallel",) can shard across v7x's 2 TCs.
    tr = min(tile_rows, _round_up(rows, sub))
    if rows > sub and -(-rows // tr) < 2:
        tr = _round_up(-(-rows // 2), sub)
    grid = -(-rows // tr)                        # ragged last block handled by Pallas

    a2 = attn_out.reshape(rows, D)
    x2 = x.reshape(rows, D)

    # --- wrapper-side weight prep (done once, in f32, then cast to bf16) ---
    gamma_f = gamma.reshape(D).astype(jnp.float32)
    beta_f = beta.reshape(D).astype(jnp.float32)
    w1_f = w1.astype(jnp.float32)
    w1_folded = (gamma_f[:, None] * w1_f).astype(jnp.bfloat16)        # gamma -> W1
    b1_folded = beta_f @ w1_f + b1.reshape(D).astype(jnp.float32)     # beta  -> b1
    w2_bf = w2.astype(jnp.bfloat16)
    biases = jnp.stack([b1_folded, b2.reshape(D).astype(jnp.float32)], axis=0)  # (2, D)

    # Right-size the scoped VMEM request (v7x has only 64 MiB physical):
    # attn/x/out tiles double-buffered + single-buffered weights/biases +
    # slack for in-kernel f32 temporaries and spills; cap well below 64 MiB.
    need = (2 * 2 * tr * D * act_item          # attn + x, double-buffered
            + 2 * tr * D * act_item            # out, double-buffered
            + 2 * D * D * 2                    # W1 + W2 (bf16, single-buffered)
            + 2 * D * 4                        # biases
            + 6 * tr * D * 4)                  # f32 temporaries headroom
    vmem_limit = int(min(max(2 * need, 8 << 20), 48 << 20))

    cost = pl.CostEstimate(
        flops=4 * rows * D * D + 8 * rows * D,
        transcendentals=rows,
        bytes_accessed=3 * rows * D * act_item + 2 * D * D * 2 + 2 * D * 4,
    )

    const = dict(pipeline_mode=pl.Buffered(1))   # index_map is (0,0) every step

    out = pl.pallas_call(
        _ln_ffn_kernel,
        out_shape=jax.ShapeDtypeStruct((rows, D), x.dtype),
        grid=(grid,),
        in_specs=[
            pl.BlockSpec((tr, D), lambda i: (i, 0)),            # attn_out rows
            pl.BlockSpec((tr, D), lambda i: (i, 0)),            # residual rows
            pl.BlockSpec((D, D), lambda i: (0, 0), **const),    # W1' (bf16)
            pl.BlockSpec((D, D), lambda i: (0, 0), **const),    # W2  (bf16)
            pl.BlockSpec((2, D), lambda i: (0, 0), **const),    # b1'/b2 (f32)
        ],
        out_specs=pl.BlockSpec((tr, D), lambda i: (i, 0)),
        compiler_params=pltpu.CompilerParams(
            dimension_semantics=("parallel",),
            vmem_limit_bytes=vmem_limit,
        ),
        cost_estimate=cost,
    )(a2, x2, w1_folded, w2_bf, biases)

    return out.reshape(B, S, D)


def encoder_ln_ffn_reference(attn_out, x, gamma, beta, w1, b1, w2, b2,
                             *, mxu_dtype=None):
    """Pure-JAX reference for FFN(LayerNorm(attn_out + x)).

    mxu_dtype=None       -> exact f32 math (torch semantics).
    mxu_dtype=bfloat16   -> mirrors the kernel numerics (gamma/beta fold +
                            bf16 matmul operands, f32 accumulate).
    """
    f32 = jnp.float32
    hf = attn_out.astype(f32) + x.astype(f32)
    mean = jnp.mean(hf, axis=-1, keepdims=True)
    var = jnp.mean((hf - mean) ** 2, axis=-1, keepdims=True)
    xn = (hf - mean) / jnp.sqrt(var + EPS)

    gamma_f = gamma.astype(f32)
    beta_f = beta.astype(f32)
    w1_f = w1.astype(f32)
    w2_f = w2.astype(f32)
    b1_f = b1.astype(f32)
    b2_f = b2.astype(f32)

    if mxu_dtype is None:
        xa = xn * gamma_f + beta_f
        z = jnp.dot(xa, w1_f, precision=jax.lax.Precision.HIGHEST) + b1_f
        z = jnp.maximum(z, 0.0)
        y = jnp.dot(z, w2_f, precision=jax.lax.Precision.HIGHEST) + b2_f
    else:
        w1_folded = (gamma_f[:, None] * w1_f).astype(mxu_dtype)
        b1_folded = beta_f @ w1_f + b1_f
        w2_q = w2_f.astype(mxu_dtype)
        z = jnp.dot(xn.astype(mxu_dtype), w1_folded,
                    preferred_element_type=f32) + b1_folded
        z = jnp.maximum(z, 0.0)
        y = jnp.dot(z.astype(mxu_dtype), w2_q,
                    preferred_element_type=f32) + b2_f
    return y.astype(x.dtype)


if __name__ == "__main__":
    key = jax.random.PRNGKey(0)
    # batch=2, lag (seq)=8, dim=128 (lane-dense hidden dim).
    B, S, D = 2, 8, 128

    ks = jax.random.split(key, 8)
    x = jax.random.normal(ks[0], (B, S, D), dtype=jnp.float32)
    # Stand-in for classicAttention(input) output (class body not in the spec).
    attn_out = jax.random.normal(ks[1], (B, S, D), dtype=jnp.float32)

    # LayerNorm params (torch init weight=1, bias=0; perturbed deterministically).
    gamma = jnp.ones((D,), jnp.float32) + 0.01 * jax.random.normal(ks[2], (D,))
    beta = 0.01 * jax.random.normal(ks[3], (D,))

    # FFN = Linear(D,D) -> ReLU -> Linear(D,D); weights stored so y = x @ W.
    w1 = jax.random.normal(ks[4], (D, D), dtype=jnp.float32) / jnp.sqrt(D)
    b1 = 0.01 * jax.random.normal(ks[5], (D,))
    w2 = jax.random.normal(ks[6], (D, D), dtype=jnp.float32) / jnp.sqrt(D)
    b2 = 0.01 * jax.random.normal(ks[7], (D,))

    out = encoder_ln_ffn(attn_out, x, gamma, beta, w1, b1, w2, b2)
    jax.block_until_ready(out)
    assert out.shape == (B, S, D)

    # Tight check against a reference mirroring the kernel numerics (bf16 MXU
    # operands, f32 accumulate).
    ref_bf16 = encoder_ln_ffn_reference(attn_out, x, gamma, beta, w1, b1, w2, b2,
                                        mxu_dtype=jnp.bfloat16)
    assert jnp.allclose(out, ref_bf16, atol=5e-3, rtol=5e-3), \
        "mismatch vs bf16-mirroring reference"

    # Looser check against exact f32 (torch) semantics: only bf16 operand
    # rounding separates them.
    ref_f32 = encoder_ln_ffn_reference(attn_out, x, gamma, beta, w1, b1, w2, b2)
    assert jnp.allclose(out, ref_f32, atol=5e-2, rtol=5e-2), \
        "mismatch vs f32 reference"

    print("KERNEL_OK")
</pallas_src>

<mosaic_0001>
module attributes {stable_mosaic.version = 11 : i64} {
  func.func @_ln_ffn_kernel(%arg0: i32, %arg1: memref<8x128xf32, #tpu.memory_space<vmem>>, %arg2: memref<8x128xf32, #tpu.memory_space<vmem>>, %arg3: memref<128x128xbf16, #tpu.memory_space<vmem>>, %arg4: memref<128x128xbf16, #tpu.memory_space<vmem>>, %arg5: memref<2x128xf32, #tpu.memory_space<vmem>>, %arg6: memref<8x128xf32, #tpu.memory_space<vmem>>) attributes {dimension_semantics = [#tpu.dimension_semantics<parallel>], iteration_bounds = array<i64: 2>, scalar_prefetch = 0 : i64, scratch_operands = 0 : i64, tpu.core_type = #tpu.core_type<tc>, window_params = [{transform_indices = @transform_0, window_bounds = array<i64: 8, 128>}, {transform_indices = @transform_1, window_bounds = array<i64: 8, 128>}, {pipeline_mode = #tpu.pipeline_mode<synchronous>, transform_indices = @transform_2, window_bounds = array<i64: 128, 128>}, {pipeline_mode = #tpu.pipeline_mode<synchronous>, transform_indices = @transform_3, window_bounds = array<i64: 128, 128>}, {pipeline_mode = #tpu.pipeline_mode<synchronous>, transform_indices = @transform_4, window_bounds = array<i64: 2, 128>}, {transform_indices = @transform_5, window_bounds = array<i64: 8, 128>}]} {
    %c0 = arith.constant 0 : index
    %c0_0 = arith.constant 0 : index
    %0 = vector.load %arg5[%c0, %c0_0] : memref<2x128xf32, #tpu.memory_space<vmem>>, vector<1x128xf32>
    %c1 = arith.constant 1 : index
    %c0_1 = arith.constant 0 : index
    %1 = vector.load %arg5[%c1, %c0_1] : memref<2x128xf32, #tpu.memory_space<vmem>>, vector<1x128xf32>
    %c0_2 = arith.constant 0 : index
    %c0_3 = arith.constant 0 : index
    %2 = vector.load %arg1[%c0_2, %c0_3] : memref<8x128xf32, #tpu.memory_space<vmem>>, vector<8x128xf32>
    %c0_4 = arith.constant 0 : index
    %c0_5 = arith.constant 0 : index
    %3 = vector.load %arg2[%c0_4, %c0_5] : memref<8x128xf32, #tpu.memory_space<vmem>>, vector<8x128xf32>
    %4 = arith.addf %2, %3 : vector<8x128xf32>
    %cst = arith.constant dense<0.000000e+00> : vector<8xf32>
    %5 = vector.multi_reduction <add>, %4, %cst [1] : vector<8x128xf32> to vector<8xf32>
    %6 = vector.shape_cast %5 : vector<8xf32> to vector<8x1xf32>
    %cst_6 = arith.constant 1.280000e+02 : f32
    %7 = vector.broadcast %cst_6 : f32 to vector<8x1xf32>
    %8 = arith.divf %6, %7 : vector<8x1xf32>
    %9 = arith.mulf %4, %4 : vector<8x128xf32>
    %cst_7 = arith.constant dense<0.000000e+00> : vector<8xf32>
    %10 = vector.multi_reduction <add>, %9, %cst_7 [1] : vector<8x128xf32> to vector<8xf32>
    %11 = vector.shape_cast %10 : vector<8xf32> to vector<8x1xf32>
    %cst_8 = arith.constant 1.280000e+02 : f32
    %12 = vector.broadcast %cst_8 : f32 to vector<8x1xf32>
    %13 = arith.divf %11, %12 : vector<8x1xf32>
    %14 = arith.mulf %8, %8 : vector<8x1xf32>
    %15 = arith.subf %13, %14 : vector<8x1xf32>
    %16 = vector.broadcast %8 : vector<8x1xf32> to vector<8x128xf32>
    %17 = arith.subf %4, %16 : vector<8x128xf32>
    %cst_9 = arith.constant 9.99999974E-6 : f32
    %18 = vector.broadcast %cst_9 : f32 to vector<8x1xf32>
    %19 = arith.addf %15, %18 : vector<8x1xf32>
    %20 = math.rsqrt %19 : vector<8x1xf32>
    %21 = vector.broadcast %20 : vector<8x1xf32> to vector<8x128xf32>
    %22 = arith.mulf %17, %21 : vector<8x128xf32>
    %23 = arith.truncf %22 : vector<8x128xf32> to vector<8x128xbf16>
    %c0_10 = arith.constant 0 : index
    %c0_11 = arith.constant 0 : index
    %24 = vector.load %arg3[%c0_10, %c0_11] : memref<128x128xbf16, #tpu.memory_space<vmem>>, vector<128x128xbf16>
    %cst_12 = arith.constant dense<0.000000e+00> : vector<8x128xf32>
    %25 = tpu.matmul %23, %24, %cst_12 {dimension_numbers = #tpu.dot_dimension_numbers<[1], [0], [0], [1], [0, 0, 1, 1], [], []>} : vector<8x128xbf16>, vector<128x128xbf16>, vector<8x128xf32> -> vector<8x128xf32>
    %26 = vector.broadcast %0 : vector<1x128xf32> to vector<8x128xf32>
    %27 = arith.addf %25, %26 : vector<8x128xf32>
    %cst_13 = arith.constant 0.000000e+00 : f32
    %28 = vector.broadcast %cst_13 : f32 to vector<8x128xf32>
    %29 = arith.maximumf %27, %28 : vector<8x128xf32>
    %30 = arith.truncf %29 : vector<8x128xf32> to vector<8x128xbf16>
    %c0_14 = arith.constant 0 : index
    %c0_15 = arith.constant 0 : index
    %31 = vector.load %arg4[%c0_14, %c0_15] : memref<128x128xbf16, #tpu.memory_space<vmem>>, vector<128x128xbf16>
    %cst_16 = arith.constant dense<0.000000e+00> : vector<8x128xf32>
    %32 = tpu.matmul %30, %31, %cst_16 {dimension_numbers = #tpu.dot_dimension_numbers<[1], [0], [0], [1], [0, 0, 1, 1], [], []>} : vector<8x128xbf16>, vector<128x128xbf16>, vector<8x128xf32> -> vector<8x128xf32>
    %33 = vector.broadcast %1 : vector<1x128xf32> to vector<8x128xf32>
    %34 = arith.addf %32, %33 : vector<8x128xf32>
    %c0_17 = arith.constant 0 : index
    %c0_18 = arith.constant 0 : index
    %35 = vector.load %arg6[%c0_17, %c0_18] : memref<8x128xf32, #tpu.memory_space<vmem>>, vector<8x128xf32>
    tpu.vector_store %arg6[%c0_17, %c0_18], %34 {strides = array<i32>} : memref<8x128xf32, #tpu.memory_space<vmem>>, vector<8x128xf32>,
    return
  }
  func.func @transform_0(%arg0: i32) -> (i32, i32) {
    %c0_i32 = arith.constant 0 : i32
    %c0_i32_0 = arith.constant 0 : i32
    return %arg0, %c0_i32 : i32, i32
  }
  func.func @transform_1(%arg0: i32) -> (i32, i32) {
    %c0_i32 = arith.constant 0 : i32
    %c0_i32_0 = arith.constant 0 : i32
    return %arg0, %c0_i32 : i32, i32
  }
  func.func @transform_2(%arg0: i32) -> (i32, i32) {
    %c0_i32 = arith.constant 0 : i32
    %c0_i32_0 = arith.constant 0 : i32
    %c0_i32_1 = arith.constant 0 : i32
    return %c0_i32, %c0_i32_0 : i32, i32
  }
  func.func @transform_3(%arg0: i32) -> (i32, i32) {
    %c0_i32 = arith.constant 0 : i32
    %c0_i32_0 = arith.constant 0 : i32
    %c0_i32_1 = arith.constant 0 : i32
    return %c0_i32, %c0_i32_0 : i32, i32
  }
  func.func @transform_4(%arg0: i32) -> (i32, i32) {
    %c0_i32 = arith.constant 0 : i32
    %c0_i32_0 = arith.constant 0 : i32
    %c0_i32_1 = arith.constant 0 : i32
    return %c0_i32, %c0_i32_0 : i32, i32
  }
  func.func @transform_5(%arg0: i32) -> (i32, i32) {
    %c0_i32 = arith.constant 0 : i32
    %c0_i32_0 = arith.constant 0 : i32
    return %arg0, %c0_i32 : i32, i32
  }
}

</mosaic_0001>

<llo_original>
// kernel: encoder_ln_ffn.1
$region0: #{encoder_ln_ffn.1}
  #allocation0 [shape = 'u32[]', space=smem, size = 0x4, offset = 0x4, fixed_abs, tag = 'smem constant byte address 0x4 - core index']
  #allocation1 [shape = 'u32[144,128]{1,0:T(1,128)}', space=vmem, size = 0x12000, scoped, tag = 'internal scratch']
  %s0 = inlined_call_operand.vmem [shape: f32[16,128], index: 0, kind: input, shape index: {}]
  %s1 = inlined_call_operand.vmem [shape: f32[16,128], index: 1, kind: input, shape index: {}]
  %s2 = inlined_call_operand.vmem [shape: bf16[128,128], index: 2, kind: input, shape index: {}]
  %s3 = inlined_call_operand.vmem [shape: bf16[128,128], index: 3, kind: input, shape index: {}]
  %s4 = inlined_call_operand.vmem [shape: f32[2,128], index: 4, kind: input, shape index: {}]
  %s5 = inlined_call_operand.hbm [shape: f32[16,128], index: 5, kind: output, shape index: {}]
  %s6 = sld [smem:[#allocation0]]
  $region53: #{encoder_ln_ffn.1} parent=0
    _
  %s8 = ssub.s32 1, %s6
  %s9 = scalar_select 0, %s8, %s6
  $region1: #{encoder_ln_ffn.1} parent=0
    #allocation2 [shape = 'u8[8192]{0}', space=vmem, size = 0x2000, scoped, tag = 'output window, operand 0']
    #allocation3 [shape = 's32[2]{0}', space=sflag, size = 0x8, scoped, tag = 'scoped memory for encoder_ln_ffn.1']
    %10 = vsyncpa [#allocation3], 0
    %s11 = scalar_lea.sflag [#allocation3], 1
    %12 = vsyncpa %s11, 0
    loop: start=0, step=1, limit=4
    $region2: #{encoder_ln_ffn.1} parent=1 // loop_pre_header
      _
    $region3: #{encoder_ln_ffn.1} parent=1 // loop_header
      %s14 = sphi 0, %s18
      %p15 = scmp.ge.s32.totalorder %s14, 4
      %s24 = sphi 0, %s26
      %s27 = sphi 0, %s24
      %s28 = sphi 0, %s27
      %s44 = sphi 0, %s28
      %s50 = sphi 0, %s52
      %s53 = sphi 0, %s50
      %s54 = sphi 0, %s53
      %s70 = sphi 0, %s54
      %s74 = sphi 0, %s74
      %s76 = sphi 0, %s74
      %s77 = sphi 0, %s76
      %s91 = sphi 0, %s77
      %s95 = sphi 0, %s95
      %s97 = sphi 0, %s95
      %s98 = sphi 0, %s97
      %s112 = sphi 0, %s98
      %s116 = sphi 0, %s116
      %s118 = sphi 0, %s116
      %s119 = sphi 0, %s118
      %s133 = sphi 0, %s119
      %s139 = sphi 0, %s141
      %s142 = sphi 0, %s139
      %s143 = sphi 0, %s142
      %s159 = sphi 0, %s143
    $region4: #{encoder_ln_ffn.1} parent=1 // loop_header_branch
      %17 = sbr.rel (%p15) target = $region8
    $region5: #{encoder_ln_ffn.1} parent=1 // loop_body
      %s19 = ssub.s32 %s14, 1
      %s20 = ssub.s32 %s14, 2
      %s21 = sadd.s32 %s14, 1
      %s22 = ssub.s32 %s14, %s21
      %p23 = scmp.eq.s32.totalorder %s22, 0
      %s25 = sadd.s32 %s24, 1
      %s26 = scalar_select %p23, %s24, %s25
      %p29 = pneg %p23
      %p30 = scmp.eq.s32.totalorder %s14, 1
      %p31 = por %p29, %p30
      %p32 = scmp.ne.s32.totalorder %s24, %s27
      %p33 = scmp.eq.s32.totalorder %s14, 0
      %p34 = por %p32, %p33
      %p35 = scmp.ne.s32.totalorder %s24, %s27
      %p36 = scmp.eq.s32.totalorder %s19, 1
      %p37 = por %p35, %p36
      %p38 = scmp.ne.s32.totalorder %s27, %s28
      %p39 = scmp.eq.s32.totalorder %s19, 0
      %p40 = por %p38, %p39
      %p41 = scmp.ne.s32.totalorder %s27, %s28
      %p42 = scmp.eq.s32.totalorder %s20, 1
      %p43 = por %p41, %p42
      %p45 = scmp.ne.s32.totalorder %s28, %s44
      %p46 = scmp.eq.s32.totalorder %s20, 0
      %p47 = por %p45, %p46
      %s48 = ssub.s32 %s14, %s21
      %p49 = scmp.eq.s32.totalorder %s48, 0
      %s51 = sadd.s32 %s50, 1
      %s52 = scalar_select %p49, %s50, %s51
      %p55 = pneg %p49
      %p56 = scmp.eq.s32.totalorder %s14, 1
      %p57 = por %p55, %p56
      %p58 = scmp.ne.s32.totalorder %s50, %s53
      %p59 = scmp.eq.s32.totalorder %s14, 0
      %p60 = por %p58, %p59
      %p61 = scmp.ne.s32.totalorder %s50, %s53
      %p62 = scmp.eq.s32.totalorder %s19, 1
      %p63 = por %p61, %p62
      %p64 = scmp.ne.s32.totalorder %s53, %s54
      %p65 = scmp.eq.s32.totalorder %s19, 0
      %p66 = por %p64, %p65
      %p67 = scmp.ne.s32.totalorder %s53, %s54
      %p68 = scmp.eq.s32.totalorder %s20, 1
      %p69 = por %p67, %p68
      %p71 = scmp.ne.s32.totalorder %s54, %s70
      %p72 = scmp.eq.s32.totalorder %s20, 0
      %p73 = por %p71, %p72
      %s75 = sadd.s32 %s74, 1
      %p78 = scmp.eq.s32.totalorder %s14, 1
      %p79 = scmp.ne.s32.totalorder %s74, %s76
      %p80 = scmp.eq.s32.totalorder %s14, 0
      %p81 = por %p79, %p80
      %p82 = scmp.ne.s32.totalorder %s74, %s76
      %p83 = scmp.eq.s32.totalorder %s19, 1
      %p84 = por %p82, %p83
      %p85 = scmp.ne.s32.totalorder %s76, %s77
      %p86 = scmp.eq.s32.totalorder %s19, 0
      %p87 = por %p85, %p86
      %p88 = scmp.ne.s32.totalorder %s76, %s77
      %p89 = scmp.eq.s32.totalorder %s20, 1
      %p90 = por %p88, %p89
      %p92 = scmp.ne.s32.totalorder %s77, %s91
      %p93 = scmp.eq.s32.totalorder %s20, 0
      %p94 = por %p92, %p93
      %s96 = sadd.s32 %s95, 1
      %p99 = scmp.eq.s32.totalorder %s14, 1
      %p100 = scmp.ne.s32.totalorder %s95, %s97
      %p101 = scmp.eq.s32.totalorder %s14, 0
      %p102 = por %p100, %p101
      %p103 = scmp.ne.s32.totalorder %s95, %s97
      %p104 = scmp.eq.s32.totalorder %s19, 1
      %p105 = por %p103, %p104
      %p106 = scmp.ne.s32.totalorder %s97, %s98
      %p107 = scmp.eq.s32.totalorder %s19, 0
      %p108 = por %p106, %p107
      %p109 = scmp.ne.s32.totalorder %s97, %s98
      %p110 = scmp.eq.s32.totalorder %s20, 1
      %p111 = por %p109, %p110
      %p113 = scmp.ne.s32.totalorder %s98, %s112
      %p114 = scmp.eq.s32.totalorder %s20, 0
      %p115 = por %p113, %p114
      %s117 = sadd.s32 %s116, 1
      %p120 = scmp.eq.s32.totalorder %s14, 1
      %p121 = scmp.ne.s32.totalorder %s116, %s118
      %p122 = scmp.eq.s32.totalorder %s14, 0
      %p123 = por %p121, %p122
      %p124 = scmp.ne.s32.totalorder %s116, %s118
      %p125 = scmp.eq.s32.totalorder %s19, 1
      %p126 = por %p124, %p125
      %p127 = scmp.ne.s32.totalorder %s118, %s119
      %p128 = scmp.eq.s32.totalorder %s19, 0
      %p129 = por %p127, %p128
      %p130 = scmp.ne.s32.totalorder %s118, %s119
      %p131 = scmp.eq.s32.totalorder %s20, 1
      %p132 = por %p130, %p131
      %p134 = scmp.ne.s32.totalorder %s119, %s133
      %p135 = scmp.eq.s32.totalorder %s20, 0
      %p136 = por %p134, %p135
      %s137 = ssub.s32 %s14, %s21
      %p138 = scmp.eq.s32.totalorder %s137, 0
      %s140 = sadd.s32 %s139, 1
      %s141 = scalar_select %p138, %s139, %s140
      %p144 = pneg %p138
      %p145 = scmp.eq.s32.totalorder %s14, 1
      %p146 = por %p144, %p145
      %p147 = scmp.ne.s32.totalorder %s139, %s142
      %p148 = scmp.eq.s32.totalorder %s14, 0
      %p149 = por %p147, %p148
      %p150 = scmp.ne.s32.totalorder %s139, %s142
      %p151 = scmp.eq.s32.totalorder %s19, 1
      %p152 = por %p150, %p151
      %p153 = scmp.ne.s32.totalorder %s142, %s143
      %p154 = scmp.eq.s32.totalorder %s19, 0
      %p155 = por %p153, %p154
      %p156 = scmp.ne.s32.totalorder %s142, %s143
      %p157 = scmp.eq.s32.totalorder %s20, 1
      %p158 = por %p156, %p157
      %p160 = scmp.ne.s32.totalorder %s143, %s159
      %p161 = scmp.eq.s32.totalorder %s20, 0
      %p162 = por %p160, %p161
      %p163 = scmp.le.s32.totalorder 1, %s14
      %p164 = scmp.lt.s32.totalorder %s14, 3
      %p165 = pnand %p163, %p164
      %p166 = pneg %p165
      // Predicated region
      $region9: #{encoder_ln_ffn.1} parent=5 // pred_check
        _
      $region10: #{encoder_ln_ffn.1} parent=5 // pred_check_branch
        %168 = sbr.rel (%p165) target = $region12
      $region11: #{encoder_ln_ffn.1} parent=5 // pred_region
        %s169 = ssub.s32 %s14, 1
        // Predicated region
        $region13: #{encoder_ln_ffn.1} parent=11 // pred_check
          %p170 = pneg %p87
        $region14: #{encoder_ln_ffn.1} parent=11 // pred_check_branch
          %172 = sbr.rel (%p170) target = $region16
        $region15: #{encoder_ln_ffn.1} parent=11 // pred_region
          _
        $region16: #{encoder_ln_ffn.1} parent=11 // pred_fallthru
          _
        // Predicated region
        $region17: #{encoder_ln_ffn.1} parent=11 // pred_check
          %p173 = pneg %p108
        $region18: #{encoder_ln_ffn.1} parent=11 // pred_check_branch
          %175 = sbr.rel (%p173) target = $region20
        $region19: #{encoder_ln_ffn.1} parent=11 // pred_region
          _
        $region20: #{encoder_ln_ffn.1} parent=11 // pred_fallthru
          _
        // Predicated region
        $region21: #{encoder_ln_ffn.1} parent=11 // pred_check
          %p176 = pneg %p129
        $region22: #{encoder_ln_ffn.1} parent=11 // pred_check_branch
          %178 = sbr.rel (%p176) target = $region24
        $region23: #{encoder_ln_ffn.1} parent=11 // pred_region
          _
        $region24: #{encoder_ln_ffn.1} parent=11 // pred_fallthru
          _
      $region12: #{encoder_ln_ffn.1} parent=5 // pred_fallthru
        _
      %p179 = scmp.lt.s32.totalorder %s14, 2
      // Predicated region
      $region25: #{encoder_ln_ffn.1} parent=5 // pred_check
        %p180 = pneg %p179
      $region26: #{encoder_ln_ffn.1} parent=5 // pred_check_branch
        %182 = sbr.rel (%p180) target = $region28
      $region27: #{encoder_ln_ffn.1} parent=5 // pred_region
        // Predicated region
        $region29: #{encoder_ln_ffn.1} parent=27 // pred_check
          %p183 = pneg %p34
        $region30: #{encoder_ln_ffn.1} parent=27 // pred_check_branch
          %185 = sbr.rel (%p183) target = $region32
        $region31: #{encoder_ln_ffn.1} parent=27 // pred_region
          %p186 = scmp.lt.s32.totalorder %s14, 1
          %s187 = scalar_select %p186, %s14, 1
          %s188 = smul.addr %s187, 8
          %s189 = scalar_lea.vmem %s0, %s188
        $region32: #{encoder_ln_ffn.1} parent=27 // pred_fallthru
          _
        // Predicated region
        $region33: #{encoder_ln_ffn.1} parent=27 // pred_check
          %p190 = pneg %p60
        $region34: #{encoder_ln_ffn.1} parent=27 // pred_check_branch
          %192 = sbr.rel (%p190) target = $region36
        $region35: #{encoder_ln_ffn.1} parent=27 // pred_region
          %p193 = scmp.lt.s32.totalorder %s14, 1
          %s194 = scalar_select %p193, %s14, 1
          %s195 = smul.addr %s194, 8
          %s196 = scalar_lea.vmem %s1, %s195
        $region36: #{encoder_ln_ffn.1} parent=27 // pred_fallthru
          _
      $region28: #{encoder_ln_ffn.1} parent=5 // pred_fallthru
        _
      %p197 = scmp.le.s32.totalorder 1, %s14
      %p198 = scmp.lt.s32.totalorder %s14, 3
      %p199 = pnand %p197, %p198
      %p200 = pneg %p199
      // Predicated region
      $region37: #{encoder_ln_ffn.1} parent=5 // pred_check
        _
      $region38: #{encoder_ln_ffn.1} parent=5 // pred_check_branch
        %202 = sbr.rel (%p199) target = $region40
      $region39: #{encoder_ln_ffn.1} parent=5 // pred_region
        %s203 = ssub.s32 %s14, 1
        %p204 = scmp.lt.s32.totalorder %s19, 1
        %s205 = scalar_select %p204, %s19, 1
        %s206 = smul.addr %s205, 8
        %s207 = scalar_lea.vmem %s0, %s206
        %p208 = pneg %p40
        %p209 = pneg %p37
        %p210 = scmp.lt.s32.totalorder %s19, 1
        %s211 = scalar_select %p210, %s19, 1
        %s212 = smul.addr %s211, 8
        %s213 = scalar_lea.vmem %s1, %s212
        %p214 = pneg %p66
        %p215 = pneg %p63
        %p216 = pneg %p87
        %p217 = pneg %p84
        %p218 = pneg %p108
        %p219 = pneg %p105
        %p220 = pneg %p129
        %p221 = pneg %p126
        %p222 = pneg %p155
        %p223 = pneg %p152
        %s224 = sand.u32 %s142, 1
        %s225 = scalar_lea.sflag [#allocation3], %s224
        %s226 = sand.u32 %s142, 1
        %s227 = smul.addr %s226, 8
        %s228 = scalar_lea.vmem [#allocation2], %s227
        %p229 = scmp.lt.s32.totalorder %s19, 1
        %s230 = scalar_select %p229, %s19, 1
        %s231 = smul.addr %s230, 8
        %s232 = scalar_lea.vmem %s0, %s231
        %p233 = scmp.lt.s32.totalorder %s19, 1
        %s234 = scalar_select %p233, %s19, 1
        %s235 = smul.addr %s234, 8
        %s236 = scalar_lea.vmem %s1, %s235
        %v238 = vld [vmem:[%s4] sm:$0x1]
        %v239 = vld [vmem:[%s4 + $0x1] sm:$0x1]
        %v240 = vld [vmem:[%s232] sm:$0xff]
        %v241 = vld [vmem:[%s236] sm:$0xff]
        %v242 = vadd.f32 %v240, %v241
        %243 = vadd.xlane.f32.xlu0 %v242
        %v244 = vpop.xlane.xlu0 %243
        %v245 = vrcp.pop 128.0
        %v246 = vmul.f32 %v244, %v245
        %v247 = vmul.f32 %v242, %v242
        %248 = vadd.xlane.f32.xlu0 %v247
        %v249 = vpop.xlane.xlu0 %248
        %v250 = vmul.f32 %v249, %v245
        %v251 = vmul.f32 %v246, %v246
        %v252 = vsub.f32 %v250, %v251
        %v253 = vsub.f32 %v242, %v246
        %v254 = vadd.f32 %v252, 1e-05
        %v255 = vrsqrt.pop %v254
        %v256 = vmul.f32 %v253, %v255
        %v257 = vpack.c.bf16 %v256, %v256
        %v258 = vld [vmem:[%s2] sm:$0xf]
        %v259 = vld [vmem:[%s2 + $0x4] sm:$0xf]
        %v260 = vld [vmem:[%s2 + $0x8] sm:$0xf]
        %v261 = vld [vmem:[%s2 + $0xc] sm:$0xf]
        %v262 = vld [vmem:[%s2 + $0x10] sm:$0xf]
        %v263 = vld [vmem:[%s2 + $0x14] sm:$0xf]
        %v264 = vld [vmem:[%s2 + $0x18] sm:$0xf]
        %v265 = vld [vmem:[%s2 + $0x1c] sm:$0xf]
        %v266 = vld [vmem:[%s2 + $0x20] sm:$0xf]
        %v267 = vld [vmem:[%s2 + $0x24] sm:$0xf]
        %v268 = vld [vmem:[%s2 + $0x28] sm:$0xf]
        %v269 = vld [vmem:[%s2 + $0x2c] sm:$0xf]
        %v270 = vld [vmem:[%s2 + $0x30] sm:$0xf]
        %v271 = vld [vmem:[%s2 + $0x34] sm:$0xf]
        %v272 = vld [vmem:[%s2 + $0x38] sm:$0xf]
        %v273 = vld [vmem:[%s2 + $0x3c] sm:$0xf]
        %v274 = vlaneseq
        %v275 = vshrl.u32 %v274, 7
        %v276 = vsub.s32 0, %v275
        %v277 = vrot.slane %v238, %v276
        %v294 = vunpack.c.l.b16 %v258
        %v295 = vunpack.c.l.b16 %v259
        %v296 = vunpack.c.l.b16 %v260
        %v297 = vunpack.c.l.b16 %v261
        %v298 = vunpack.c.l.b16 %v262
        %v299 = vunpack.c.l.b16 %v263
        %v300 = vunpack.c.l.b16 %v264
        %v301 = vunpack.c.l.b16 %v265
        %v302 = vunpack.c.l.b16 %v266
        %v303 = vunpack.c.l.b16 %v267
        %v304 = vunpack.c.l.b16 %v268
        %v305 = vunpack.c.l.b16 %v269
        %v306 = vunpack.c.l.b16 %v270
        %v307 = vunpack.c.l.b16 %v271
        %v308 = vunpack.c.l.b16 %v272
        %v309 = vunpack.c.l.b16 %v273
        %v310 = vpack.c.b16 %v295, %v294
        %v311 = vpack.c.b16 %v297, %v296
        %v312 = vpack.c.b16 %v299, %v298
        %v313 = vpack.c.b16 %v301, %v300
        %v314 = vpack.c.b16 %v303, %v302
        %v315 = vpack.c.b16 %v305, %v304
        %v316 = vpack.c.b16 %v307, %v306
        %v317 = vpack.c.b16 %v309, %v308
        %326 = vmatprep.subr.bf16.mxu0 0
        %327 = vmatpush1.bf16.msra.mxu0 %v317
        %328 = vmatprep.subr.bf16.mxu0 0
        %329 = vmatpush1.bf16.msra.mxu0 %v316
        %330 = vmatprep.subr.bf16.mxu0 0
        %331 = vmatpush1.bf16.msra.mxu0 %v315
        %332 = vmatprep.subr.bf16.mxu0 0
        %333 = vmatpush1.bf16.msra.mxu0 %v314
        %334 = vmatprep.subr.bf16.mxu0 0
        %335 = vmatpush1.bf16.msra.mxu0 %v313
        %336 = vmatprep.subr.bf16.mxu0 0
        %337 = vmatpush1.bf16.msra.mxu0 %v312
        %338 = vmatprep.subr.bf16.mxu0 0
        %339 = vmatpush1.bf16.msra.mxu0 %v311
        %340 = vmatprep.subr.bf16.mxu0 0
        %341 = vmatpush1.bf16.msra.mxu0 %v310
        %342 = vmatprep.subr.bf16.mxu0 0
        %343 = vmatpush2.bf16.msra.mxu0 0
        %344 = vmatprep.subr.bf16.mxu0 0
        %345 = vmatpush2.bf16.msra.mxu0 0
        %346 = vmatprep.subr.bf16.mxu0 0
        %347 = vmatpush2.bf16.msra.mxu0 0
        %348 = vmatprep.subr.bf16.mxu0 0
        %349 = vmatpush2.bf16.msra.mxu0 0
        %350 = vmatprep.subr.bf16.mxu0 0
        %351 = vmatpush2.bf16.msra.mxu0 0
        %352 = vmatprep.subr.bf16.mxu0 0
        %353 = vmatpush2.bf16.msra.mxu0 0
        %354 = vmatprep.subr.bf16.mxu0 0
        %355 = vmatpush2.bf16.msra.mxu0 0
        %356 = vmatprep.subr.bf16.mxu0 0
        %357 = vmatpush2.bf16.msra.mxu0 0
        %358 = vmatprep.mubr.bf16.mxu0 0
        %359 = vmatmul.mubr.bf16.gmra.mxu0 %v257
        %v360 = vpop.f32.mrf.mxu0
        %v361 = vadd.f32 %v277, %v360
        %v362 = vpop.f32.mrf.mxu0
        %v363 = vpop.f32.mrf.mxu0
        %v364 = vpop.f32.mrf.mxu0
        %365 = vdwg.mxu0
        %v366 = vmax.f32 %v361, 0.0
        %v367 = vpack.c.bf16 %v366, %v366
        %v368 = vld [vmem:[%s3] sm:$0xf]
        %v369 = vld [vmem:[%s3 + $0x4] sm:$0xf]
        %v370 = vld [vmem:[%s3 + $0x8] sm:$0xf]
        %v371 = vld [vmem:[%s3 + $0xc] sm:$0xf]
        %v372 = vld [vmem:[%s3 + $0x10] sm:$0xf]
        %v373 = vld [vmem:[%s3 + $0x14] sm:$0xf]
        %v374 = vld [vmem:[%s3 + $0x18] sm:$0xf]
        %v375 = vld [vmem:[%s3 + $0x1c] sm:$0xf]
        %v376 = vld [vmem:[%s3 + $0x20] sm:$0xf]
        %v377 = vld [vmem:[%s3 + $0x24] sm:$0xf]
        %v378 = vld [vmem:[%s3 + $0x28] sm:$0xf]
        %v379 = vld [vmem:[%s3 + $0x2c] sm:$0xf]
        %v380 = vld [vmem:[%s3 + $0x30] sm:$0xf]
        %v381 = vld [vmem:[%s3 + $0x34] sm:$0xf]
        %v382 = vld [vmem:[%s3 + $0x38] sm:$0xf]
        %v383 = vld [vmem:[%s3 + $0x3c] sm:$0xf]
        %v384 = vlaneseq
        %v385 = vshrl.u32 %v384, 7
        %v386 = vsub.s32 0, %v385
        %v387 = vrot.slane %v239, %v386
        %v404 = vunpack.c.l.b16 %v368
        %v405 = vunpack.c.l.b16 %v369
        %v406 = vunpack.c.l.b16 %v370
        %v407 = vunpack.c.l.b16 %v371
        %v408 = vunpack.c.l.b16 %v372
        %v409 = vunpack.c.l.b16 %v373
        %v410 = vunpack.c.l.b16 %v374
        %v411 = vunpack.c.l.b16 %v375
        %v412 = vunpack.c.l.b16 %v376
        %v413 = vunpack.c.l.b16 %v377
        %v414 = vunpack.c.l.b16 %v378
        %v415 = vunpack.c.l.b16 %v379
        %v416 = vunpack.c.l.b16 %v380
        %v417 = vunpack.c.l.b16 %v381
        %v418 = vunpack.c.l.b16 %v382
        %v419 = vunpack.c.l.b16 %v383
        %v420 = vpack.c.b16 %v405, %v404
        %v421 = vpack.c.b16 %v407, %v406
        %v422 = vpack.c.b16 %v409, %v408
        %v423 = vpack.c.b16 %v411, %v410
        %v424 = vpack.c.b16 %v413, %v412
        %v425 = vpack.c.b16 %v415, %v414
        %v426 = vpack.c.b16 %v417, %v416
        %v427 = vpack.c.b16 %v419, %v418
        %436 = vmatprep.subr.bf16.mxu0 0
        %437 = vmatpush1.bf16.msra.mxu0 %v427
        %438 = vmatprep.subr.bf16.mxu0 0
        %439 = vmatpush1.bf16.msra.mxu0 %v426
        %440 = vmatprep.subr.bf16.mxu0 0
        %441 = vmatpush1.bf16.msra.mxu0 %v425
        %442 = vmatprep.subr.bf16.mxu0 0
        %443 = vmatpush1.bf16.msra.mxu0 %v424
        %444 = vmatprep.subr.bf16.mxu0 0
        %445 = vmatpush1.bf16.msra.mxu0 %v423
        %446 = vmatprep.subr.bf16.mxu0 0
        %447 = vmatpush1.bf16.msra.mxu0 %v422
        %448 = vmatprep.subr.bf16.mxu0 0
        %449 = vmatpush1.bf16.msra.mxu0 %v421
        %450 = vmatprep.subr.bf16.mxu0 0
        %451 = vmatpush1.bf16.msra.mxu0 %v420
        %452 = vmatprep.subr.bf16.mxu0 0
        %453 = vmatpush2.bf16.msra.mxu0 0
        %454 = vmatprep.subr.bf16.mxu0 0
        %455 = vmatpush2.bf16.msra.mxu0 0
        %456 = vmatprep.subr.bf16.mxu0 0
        %457 = vmatpush2.bf16.msra.mxu0 0
        %458 = vmatprep.subr.bf16.mxu0 0
        %459 = vmatpush2.bf16.msra.mxu0 0
        %460 = vmatprep.subr.bf16.mxu0 0
        %461 = vmatpush2.bf16.msra.mxu0 0
        %462 = vmatprep.subr.bf16.mxu0 0
        %463 = vmatpush2.bf16.msra.mxu0 0
        %464 = vmatprep.subr.bf16.mxu0 0
        %465 = vmatpush2.bf16.msra.mxu0 0
        %466 = vmatprep.subr.bf16.mxu0 0
        %467 = vmatpush2.bf16.msra.mxu0 0
        %468 = vmatprep.mubr.bf16.mxu0 0
        %469 = vmatmul.mubr.bf16.gmra.mxu0 %v367
        %v470 = vpop.f32.mrf.mxu0
        %v471 = vadd.f32 %v387, %v470
        %v472 = vpop.f32.mrf.mxu0
        %v473 = vpop.f32.mrf.mxu0
        %v474 = vpop.f32.mrf.mxu0
        %475 = vdwg.mxu0
        %476 = vst [vmem:[%s228] sm:$0xff] %v471
        %s477 = sand.u32 %s142, 1
        %s478 = scalar_lea.sflag [#allocation3], %s477
        %s479 = sand.u32 %s142, 1
        %s480 = smul.addr %s479, 8
        %s481 = scalar_lea.vmem [#allocation2], %s480
        // Predicated region
        $region41: #{encoder_ln_ffn.1} parent=39 // pred_check
          %p482 = pneg %p152
        $region42: #{encoder_ln_ffn.1} parent=39 // pred_check_branch
          %484 = sbr.rel (%p482) target = $region44
        $region43: #{encoder_ln_ffn.1} parent=39 // pred_region
          %s486 = ssub.s32 128, 128
          %487 = vsyncadd %s478, %s486
          %s488 = smul.addr %s19, 128
          %s489 = scalar_lea.hbm %s5, %s488
          %s491 = sshll.u32 %s481, 4
          %s492 = int_to_ptr.vmem [resolvable:$true] %s491
          %494 = dma.vmem_to_hbm [thread:$0]  %s492, 128, %s489, %s478
        $region44: #{encoder_ln_ffn.1} parent=39 // pred_fallthru
          _
      $region40: #{encoder_ln_ffn.1} parent=5 // pred_fallthru
        _
      %p495 = scmp.le.s32.totalorder 2, %s14
      // Predicated region
      $region45: #{encoder_ln_ffn.1} parent=5 // pred_check
        %p496 = pneg %p495
      $region46: #{encoder_ln_ffn.1} parent=5 // pred_check_branch
        %498 = sbr.rel (%p496) target = $region48
      $region47: #{encoder_ln_ffn.1} parent=5 // pred_region
        %s499 = ssub.s32 %s14, 2
        // Predicated region
        $region49: #{encoder_ln_ffn.1} parent=47 // pred_check
          %p500 = pneg %p158
        $region50: #{encoder_ln_ffn.1} parent=47 // pred_check_branch
          %502 = sbr.rel (%p500) target = $region52
        $region51: #{encoder_ln_ffn.1} parent=47 // pred_region
          %s503 = sand.u32 %s143, 1
          %s504 = scalar_lea.sflag [#allocation3], %s503
          %s505 = sand.u32 %s143, 1
          %s506 = smul.addr %s505, 8
          %s507 = scalar_lea.vmem [#allocation2], %s506
          %508 = dma.done %s504, 128
        $region52: #{encoder_ln_ffn.1} parent=47 // pred_fallthru
          _
      $region48: #{encoder_ln_ffn.1} parent=5 // pred_fallthru
        _
    $region6: #{encoder_ln_ffn.1} parent=1 // loop_footer
      %s18 = sadd.s32 1, %s14
    $region7: #{encoder_ln_ffn.1} parent=1 // loop_footer_branch
      %13 = sbr.rel target = $region3
    $region8: #{encoder_ln_ffn.1} parent=1 // loop_exit
      _
    %509 = vsyncpa [#allocation3], 1
    %s510 = scalar_lea.sflag [#allocation3], 1
    %511 = vsyncpa %s510, 1

</llo_original>
